<compile_context>
chip_gen: v7x
topology: tpu7x:2x2x1
jax: 0.10.0
libtpu: 0.0.40
codegen_flags: <defaults>
</compile_context>

<pallas_src>
import functools

import jax
import jax.numpy as jnp
from jax import lax
from jax.experimental import pallas as pl
from jax.experimental.pallas import tpu as pltpu

BN_EPS = 1e-5

# Padded (lane/sublane aligned) sizes baked into the kernels.
K0_PAD = 256          # dense_fp contraction dim    (167 -> 256)
H0_PAD = 128          # fp_embed_size / BN features ( 32 -> 128)
H1_PAD = 128          # FC2.fc1 hidden              ( 16 -> 128)
TILE_B_DEFAULT = 2048
VMEM_LIMIT_BYTES = 32 * 1024 * 1024   # explicit scoped-VMEM budget, safe on all gens


def _round_up(x, m):
    return (x + m - 1) // m * m


def _choose_tiling(n_valid, tile_b):
    """Batch tiling: multiple of 32 (int8/bf16 sublane packing); prefer >=2
    grid steps so the "parallel" batch axis can span both v7x TensorCores."""
    tile_b = _round_up(max(32, min(tile_b, _round_up(n_valid, 32))), 32)
    if n_valid > 32 and _round_up(n_valid, tile_b) == tile_b:
        tile_b = _round_up((n_valid + 1) // 2, 32)
    b_pad = _round_up(n_valid, tile_b)
    return tile_b, b_pad


# ---------------------------------------------------------------------------
# Pass 1: per-batch-tile partial BN statistics of h0 = relu(fp @ w0 + b0).
# Each grid step writes its own partial block ("parallel" batch axis); the
# tiny cross-tile reduction happens outside the kernel.
# ---------------------------------------------------------------------------
def _stats_kernel(fp_ref, w0_ref, b0_ref, stats_ref, *, tile_b, n_valid):
    fp = fp_ref[...].astype(jnp.bfloat16)              # int8 -> bf16 (VPU slack)
    h0 = jnp.dot(fp, w0_ref[...],
                 preferred_element_type=jnp.float32) + b0_ref[...]
    h0 = jnp.maximum(h0, 0.0)                          # [tile_b, H0_PAD]

    if n_valid % tile_b != 0:
        # Mask zero-padded batch rows so they do not pollute the batch stats.
        row = (pl.program_id(0) * tile_b
               + lax.broadcasted_iota(jnp.int32, (tile_b, 1), 0))
        h0 = jnp.where(row < n_valid, h0, 0.0)

    s = jnp.sum(h0, axis=0, keepdims=True)             # [1, H0_PAD]
    ss = jnp.sum(h0 * h0, axis=0, keepdims=True)       # [1, H0_PAD]
    # TODO(synk): E[x^2]-E[x]^2 in f32 is fine at these magnitudes; switch to
    # mean-centered per-tile partials if feature scale / batch size grows.
    stats_ref[...] = jnp.concatenate([s, ss], axis=0)[None, :, :]


# ---------------------------------------------------------------------------
# Pass 2: full fused forward with BatchNorm already folded into (w1, b1).
# ---------------------------------------------------------------------------
def _forward_kernel(fp_ref, w0_ref, b0_ref, w1_ref, b1_ref, w2_ref, b2_ref,
                    out_ref):
    # dense_fp + ReLU  (int8 -> bf16 operand, MXU matmul, f32 accumulation)
    fp = fp_ref[...].astype(jnp.bfloat16)
    h0 = jnp.dot(fp, w0_ref[...],
                 preferred_element_type=jnp.float32) + b0_ref[...]
    h0 = jnp.maximum(h0, 0.0)

    # FC2.fc1 + ReLU (BN scale/shift pre-folded into w1/b1 outside the kernel)
    h1 = jnp.dot(h0.astype(jnp.bfloat16), w1_ref[...],
                 preferred_element_type=jnp.float32) + b1_ref[...]
    h1 = jnp.maximum(h1, 0.0)

    # Dropout(p=0) == identity; FC2.fc2 -> unpadded (tile_b, out_size) block
    out_ref[...] = (jnp.dot(h1.astype(jnp.bfloat16), w2_ref[...],
                            preferred_element_type=jnp.float32) + b2_ref[...])


# ---------------------------------------------------------------------------
# One-time input layout prep (hoisted OUT of the hot path)
# ---------------------------------------------------------------------------
def prepare_fp(fp, *, tile_b=TILE_B_DEFAULT, dtype=jnp.int8):
    """Zero-pad fp to the kernel layout [b_pad, K0_PAD] and store as int8
    (exact for 0/1 MACCS bits). Use dtype=jnp.bfloat16 for non-binary fp."""
    B, F = fp.shape
    assert F <= K0_PAD
    _, b_pad = _choose_tiling(B, tile_b)
    fp_p = jnp.zeros((b_pad, K0_PAD), dtype)
    fp_p = fp_p.at[:B, :F].set(fp.astype(dtype))
    return fp_p, B


# ---------------------------------------------------------------------------
# Wrapper (hot path): two pipelined Pallas passes + tiny JAX BN fold.
# ---------------------------------------------------------------------------
def drug_encoder(fp_p, n_valid, params, *, tile_b=TILE_B_DEFAULT):
    """`fp_p` must come from prepare_fp, `params` from prepare_params."""
    b_pad, k = fp_p.shape
    assert k == K0_PAD
    tile_b, b_pad_expected = _choose_tiling(n_valid, tile_b)
    assert b_pad == b_pad_expected and b_pad % tile_b == 0
    nb = b_pad // tile_b
    out_size = params["out_size"]

    const2 = lambda i: (0, 0)                       # resident weights/biases
    fp_spec = pl.BlockSpec((tile_b, K0_PAD), lambda i: (i, 0))
    w0_spec = pl.BlockSpec((K0_PAD, H0_PAD), const2)
    w1_spec = pl.BlockSpec((H0_PAD, H1_PAD), const2)
    w2_spec = pl.BlockSpec((H1_PAD, out_size), const2)
    v128_spec = pl.BlockSpec((1, H0_PAD), const2)
    vout_spec = pl.BlockSpec((1, out_size), const2)
    cparams = pltpu.CompilerParams(dimension_semantics=("parallel",),
                                   vmem_limit_bytes=VMEM_LIMIT_BYTES)

    # -- pass 1: per-tile BN partial sums ------------------------------------
    stats = pl.pallas_call(
        functools.partial(_stats_kernel, tile_b=tile_b, n_valid=n_valid),
        out_shape=jax.ShapeDtypeStruct((nb, 2, H0_PAD), jnp.float32),
        grid=(nb,),
        in_specs=[fp_spec, w0_spec, v128_spec],
        out_specs=pl.BlockSpec((1, 2, H0_PAD), lambda i: (i, 0, 0)),
        compiler_params=cparams,
    )(fp_p, params["w0"], params["b0"])

    # -- tiny JAX step: global BN stats + fold scale/shift into fc1 ----------
    tot = jnp.sum(stats, axis=0)                              # [2, H0_PAD]
    mean = tot[0] / n_valid
    var = jnp.maximum(tot[1] / n_valid - mean * mean, 0.0)    # biased variance
    inv_std = lax.rsqrt(var + BN_EPS)
    scale = params["gamma"][0] * inv_std                      # [H0_PAD]
    shift = params["beta"][0] - mean * scale                  # [H0_PAD]
    w1f = params["w1"]                                        # f32 [H0_PAD, H1_PAD]
    w1p = (scale[:, None] * w1f).astype(jnp.bfloat16)         # folded fc1 weight
    b1p = (shift @ w1f + params["b1"][0])[None, :]            # f32 [1, H1_PAD]

    # -- pass 2: fused forward ------------------------------------------------
    out = pl.pallas_call(
        _forward_kernel,
        out_shape=jax.ShapeDtypeStruct((b_pad, out_size), jnp.float32),
        grid=(nb,),
        in_specs=[fp_spec, w0_spec, v128_spec, w1_spec, v128_spec,
                  w2_spec, vout_spec],
        out_specs=pl.BlockSpec((tile_b, out_size), lambda i: (i, 0)),
        compiler_params=cparams,
    )(fp_p, params["w0"], params["b0"], w1p, b1p, params["w2"], params["b2"])

    return out[:n_valid]


# ---------------------------------------------------------------------------
# Parameters
# ---------------------------------------------------------------------------
def init_params(key, num_drug_fp=167, fp_embed_size=32, out_size=64):
    """PyTorch-shaped (unpadded, f32) parameters."""
    hidden = fp_embed_size // 2
    ks = jax.random.split(key, 3)

    def linear(k, fan_in, fan_out):
        bound = 1.0 / jnp.sqrt(jnp.float32(fan_in))
        kw, kb = jax.random.split(k)
        w = jax.random.uniform(kw, (fan_in, fan_out), jnp.float32, -bound, bound)
        b = jax.random.uniform(kb, (fan_out,), jnp.float32, -bound, bound)
        return w, b

    w0, b0 = linear(ks[0], num_drug_fp, fp_embed_size)   # dense_fp
    w1, b1 = linear(ks[1], fp_embed_size, hidden)        # FC2.fc1
    w2, b2 = linear(ks[2], hidden, out_size)             # FC2.fc2
    gamma = jnp.ones((fp_embed_size,), jnp.float32)      # BatchNorm1d.weight
    beta = jnp.zeros((fp_embed_size,), jnp.float32)      # BatchNorm1d.bias
    return dict(w0=w0, b0=b0, gamma=gamma, beta=beta,
                w1=w1, b1=b1, w2=w2, b2=b2)


def prepare_params(raw):
    """One-time padding / dtype prep for the kernels (zero-pad is exact)."""
    out_size = raw["w2"].shape[1]

    def pad_mat(x, r, c, dtype):
        p = jnp.zeros((r, c), dtype)
        return p.at[:x.shape[0], :x.shape[1]].set(x.astype(dtype))

    def pad_vec(x, c):
        p = jnp.zeros((1, c), jnp.float32)
        return p.at[0, :x.shape[0]].set(x)

    return dict(
        w0=pad_mat(raw["w0"], K0_PAD, H0_PAD, jnp.bfloat16),   # bf16 MXU operand
        b0=pad_vec(raw["b0"], H0_PAD),
        gamma=pad_vec(raw["gamma"], H0_PAD),   # padded features get gamma=0
        beta=pad_vec(raw["beta"], H0_PAD),
        w1=pad_mat(raw["w1"], H0_PAD, H1_PAD, jnp.float32),    # f32: BN folded per call
        b1=pad_vec(raw["b1"], H1_PAD),
        w2=pad_mat(raw["w2"], H1_PAD, out_size, jnp.bfloat16), # unpadded out cols
        b2=pad_vec(raw["b2"], out_size),
        out_size=out_size,
    )


# ---------------------------------------------------------------------------
# Pure-JAX f32 reference (PyTorch-equivalent semantics). The kernels store
# w0/w1/w2 operands in bf16 (f32 accumulation), so compare with a modest
# tolerance that covers that intentional quantization.
# ---------------------------------------------------------------------------
def drug_encoder_ref(fp, raw):
    h0 = jnp.maximum(fp @ raw["w0"] + raw["b0"][None, :], 0.0)
    mean = jnp.mean(h0, axis=0, keepdims=True)
    var = jnp.mean((h0 - mean) ** 2, axis=0, keepdims=True)
    h = ((h0 - mean) * lax.rsqrt(var + BN_EPS) * raw["gamma"][None, :]
         + raw["beta"][None, :])
    h1 = jnp.maximum(h @ raw["w1"] + raw["b1"][None, :], 0.0)
    return h1 @ raw["w2"] + raw["b2"][None, :]


if __name__ == "__main__":
    key = jax.random.PRNGKey(0)
    k_fp, k_params = jax.random.split(key)

    B, NUM_FP = 100, 167
    # MACCS-style 0/1 fingerprint input (int8 storage is exact).
    fp = jax.random.bernoulli(k_fp, 0.5, (B, NUM_FP)).astype(jnp.float32)

    raw = init_params(k_params, num_drug_fp=NUM_FP, fp_embed_size=32, out_size=64)
    params = prepare_params(raw)

    # One-time layout prep (hoisted out of the hot path): padded int8 slab.
    # tile_b=64 keeps the demo small while exercising multi-tile streaming and
    # the masked-partial-batch path (B=100 -> padded to 128, 2 grid steps).
    fp_p, n_valid = prepare_fp(fp, tile_b=64)

    out = drug_encoder(fp_p, n_valid, params, tile_b=64)
    out = jax.block_until_ready(out)

    ref = drug_encoder_ref(fp, raw)
    assert out.shape == (B, 64), out.shape
    max_err = float(jnp.max(jnp.abs(out - ref)))
    assert jnp.allclose(out, ref, atol=5e-2, rtol=5e-2), f"mismatch: {max_err}"

    print("KERNEL_OK")
</pallas_src>

<mosaic_0001>
module attributes {stable_mosaic.version = 11 : i64} {
  func.func @_stats_kernel(%arg0: i32, %arg1: memref<64x256xi8, #tpu.memory_space<vmem>>, %arg2: memref<256x128xbf16, #tpu.memory_space<vmem>>, %arg3: memref<1x128xf32, #tpu.memory_space<vmem>>, %arg4: memref<1x2x128xf32, #tpu.memory_space<vmem>>) attributes {dimension_semantics = [#tpu.dimension_semantics<parallel>], iteration_bounds = array<i64: 2>, scalar_prefetch = 0 : i64, scratch_operands = 0 : i64, tpu.core_type = #tpu.core_type<tc>, window_params = [{transform_indices = @transform_0, window_bounds = array<i64: 64, 256>}, {pipeline_mode = #tpu.pipeline_mode<synchronous>, transform_indices = @transform_1, window_bounds = array<i64: 256, 128>}, {pipeline_mode = #tpu.pipeline_mode<synchronous>, transform_indices = @transform_2, window_bounds = array<i64: 1, 128>}, {transform_indices = @transform_3, window_bounds = array<i64: 1, 2, 128>}]} {
    %c0 = arith.constant 0 : index
    %c0_0 = arith.constant 0 : index
    %0 = vector.load %arg1[%c0, %c0_0] : memref<64x256xi8, #tpu.memory_space<vmem>>, vector<64x256xi8>
    %1 = arith.sitofp %0 : vector<64x256xi8> to vector<64x256xbf16>
    %c0_1 = arith.constant 0 : index
    %c0_2 = arith.constant 0 : index
    %2 = vector.load %arg2[%c0_1, %c0_2] : memref<256x128xbf16, #tpu.memory_space<vmem>>, vector<256x128xbf16>
    %cst = arith.constant dense<0.000000e+00> : vector<64x128xf32>
    %3 = tpu.matmul %1, %2, %cst {dimension_numbers = #tpu.dot_dimension_numbers<[1], [0], [0], [1], [0, 0, 1, 1], [], []>} : vector<64x256xbf16>, vector<256x128xbf16>, vector<64x128xf32> -> vector<64x128xf32>
    %c0_3 = arith.constant 0 : index
    %c0_4 = arith.constant 0 : index
    %4 = vector.load %arg3[%c0_3, %c0_4] : memref<1x128xf32, #tpu.memory_space<vmem>>, vector<1x128xf32>
    %5 = vector.broadcast %4 : vector<1x128xf32> to vector<64x128xf32>
    %6 = arith.addf %3, %5 : vector<64x128xf32>
    %cst_5 = arith.constant 0.000000e+00 : f32
    %7 = vector.broadcast %cst_5 : f32 to vector<64x128xf32>
    %8 = arith.maximumf %6, %7 : vector<64x128xf32>
    %c64_i32 = arith.constant 64 : i32
    %9 = arith.muli %arg0, %c64_i32 : i32
    %10 = tpu.iota {dimensions = array<i32: 0>} : vector<64x1xi32>
    %11 = vector.broadcast %9 : i32 to vector<64x1xi32>
    %12 = arith.addi %11, %10 : vector<64x1xi32>
    %c100_i32 = arith.constant 100 : i32
    %13 = vector.broadcast %c100_i32 : i32 to vector<64x1xi32>
    %14 = arith.cmpi slt, %12, %13 : vector<64x1xi32>
    %cst_6 = arith.constant 0.000000e+00 : f32
    %15 = vector.shape_cast %14 : vector<64x1xi1> to vector<64x1xi1>
    %16 = vector.broadcast %15 : vector<64x1xi1> to vector<64x128xi1>
    %17 = vector.broadcast %cst_6 : f32 to vector<64x128xf32>
    %18 = arith.select %16, %8, %17 : vector<64x128xi1>, vector<64x128xf32>
    %cst_7 = arith.constant dense<0.000000e+00> : vector<128xf32>
    %19 = vector.multi_reduction <add>, %18, %cst_7 [0] : vector<64x128xf32> to vector<128xf32>
    %20 = vector.shape_cast %19 : vector<128xf32> to vector<1x128xf32>
    %21 = arith.mulf %18, %18 : vector<64x128xf32>
    %cst_8 = arith.constant dense<0.000000e+00> : vector<128xf32>
    %22 = vector.multi_reduction <add>, %21, %cst_8 [0] : vector<64x128xf32> to vector<128xf32>
    %23 = vector.shape_cast %22 : vector<128xf32> to vector<1x128xf32>
    %24 = tpu.concatenate %20, %23 in 0 : vector<1x128xf32>, vector<1x128xf32> -> vector<2x128xf32>
    %25 = vector.shape_cast %24 : vector<2x128xf32> to vector<1x2x128xf32>
    %c0_9 = arith.constant 0 : index
    %c0_10 = arith.constant 0 : index
    %c0_11 = arith.constant 0 : index
    %26 = vector.load %arg4[%c0_9, %c0_10, %c0_11] : memref<1x2x128xf32, #tpu.memory_space<vmem>>, vector<1x2x128xf32>
    tpu.vector_store %arg4[%c0_9, %c0_10, %c0_11], %25 {strides = array<i32>} : memref<1x2x128xf32, #tpu.memory_space<vmem>>, vector<1x2x128xf32>,
    return
  }
  func.func @transform_0(%arg0: i32) -> (i32, i32) {
    %c0_i32 = arith.constant 0 : i32
    %c0_i32_0 = arith.constant 0 : i32
    return %arg0, %c0_i32 : i32, i32
  }
  func.func @transform_1(%arg0: i32) -> (i32, i32) {
    %c0_i32 = arith.constant 0 : i32
    %c0_i32_0 = arith.constant 0 : i32
    %c0_i32_1 = arith.constant 0 : i32
    return %c0_i32, %c0_i32_0 : i32, i32
  }
  func.func @transform_2(%arg0: i32) -> (i32, i32) {
    %c0_i32 = arith.constant 0 : i32
    %c0_i32_0 = arith.constant 0 : i32
    %c0_i32_1 = arith.constant 0 : i32
    return %c0_i32, %c0_i32_0 : i32, i32
  }
  func.func @transform_3(%arg0: i32) -> (i32, i32, i32) {
    %c0_i32 = arith.constant 0 : i32
    %c0_i32_0 = arith.constant 0 : i32
    %c0_i32_1 = arith.constant 0 : i32
    return %arg0, %c0_i32, %c0_i32_0 : i32, i32, i32
  }
}

</mosaic_0001>

<llo_original>
// kernel: tpu_custom_call.1
$region0: #{tpu_custom_call.1}
  #allocation0 [shape = 'u32[]', space=smem, size = 0x4, offset = 0x4, fixed_abs, tag = 'smem constant byte address 0x4 - core index']
  #allocation1 [shape = 'u32[144,128]{1,0:T(1,128)}', space=vmem, size = 0x12000, scoped, tag = 'internal scratch']
  %s0 = inlined_call_operand.hbm [shape: s8[128,256], index: 0, kind: input, shape index: {}]
  %s1 = inlined_call_operand.hbm [shape: bf16[256,128], index: 1, kind: input, shape index: {}]
  %s2 = inlined_call_operand.vmem [shape: f32[1,128], index: 2, kind: input, shape index: {}]
  %s3 = inlined_call_operand.hbm [shape: f32[2,2,128], index: 3, kind: output, shape index: {}]
  %s4 = sld [smem:[#allocation0]]
  $region53: #{tpu_custom_call.1} parent=0
    _
  %s6 = ssub.s32 1, %s4
  %s7 = scalar_select 0, %s6, %s4
  $region1: #{tpu_custom_call.1} parent=0
    #allocation2 [shape = 'u8[32768]{0}', space=vmem, size = 0x8000, scoped, tag = 'input window, operand 0']
    #allocation3 [shape = 's32[2]{0}', space=sflag, size = 0x8, scoped, tag = 'scoped memory for tpu_custom_call.1']
    #allocation4 [shape = 's32[2]{0}', space=sflag, size = 0x8, scoped, tag = 'scoped memory for tpu_custom_call.1']
    #allocation5 [shape = 'u8[65536]{0}', space=vmem, size = 0x10000, scoped, tag = 'input window, operand 1, single buffered']
    #allocation6 [shape = 's32[1]{0}', space=sflag, size = 0x4, scoped, tag = 'scoped memory for tpu_custom_call.1']
    #allocation7 [shape = 'u8[2048]{0}', space=vmem, size = 0x800, scoped, tag = 'output window, operand 0']
    %8 = vsyncpa [#allocation3], 0
    %s9 = scalar_lea.sflag [#allocation3], 1
    %10 = vsyncpa %s9, 0
    %11 = vsyncpa [#allocation6], 0
    %12 = vsyncpa [#allocation4], 0
    %s13 = scalar_lea.sflag [#allocation4], 1
    %14 = vsyncpa %s13, 0
    loop: start=0, step=1, limit=4
    $region2: #{tpu_custom_call.1} parent=1 // loop_pre_header
      _
    $region3: #{tpu_custom_call.1} parent=1 // loop_header
      %s16 = sphi 0, %s20
      %p17 = scmp.ge.s32.totalorder %s16, 4
      %s26 = sphi 0, %s28
      %s29 = sphi 0, %s26
      %s30 = sphi 0, %s29
      %s46 = sphi 0, %s30
      %s50 = sphi 0, %s50
      %s52 = sphi 0, %s50
      %s53 = sphi 0, %s52
      %s67 = sphi 0, %s53
      %s71 = sphi 0, %s71
      %s73 = sphi 0, %s71
      %s74 = sphi 0, %s73
      %s88 = sphi 0, %s74
      %s94 = sphi 0, %s96
      %s97 = sphi 0, %s94
      %s98 = sphi 0, %s97
      %s114 = sphi 0, %s98
    $region4: #{tpu_custom_call.1} parent=1 // loop_header_branch
      %19 = sbr.rel (%p17) target = $region8
    $region5: #{tpu_custom_call.1} parent=1 // loop_body
      %s21 = ssub.s32 %s16, 1
      %s22 = ssub.s32 %s16, 2
      %s23 = sadd.s32 %s16, 1
      %s24 = ssub.s32 %s16, %s23
      %p25 = scmp.eq.s32.totalorder %s24, 0
      %s27 = sadd.s32 %s26, 1
      %s28 = scalar_select %p25, %s26, %s27
      %p31 = pneg %p25
      %p32 = scmp.eq.s32.totalorder %s16, 1
      %p33 = por %p31, %p32
      %p34 = scmp.ne.s32.totalorder %s26, %s29
      %p35 = scmp.eq.s32.totalorder %s16, 0
      %p36 = por %p34, %p35
      %p37 = scmp.ne.s32.totalorder %s26, %s29
      %p38 = scmp.eq.s32.totalorder %s21, 1
      %p39 = por %p37, %p38
      %p40 = scmp.ne.s32.totalorder %s29, %s30
      %p41 = scmp.eq.s32.totalorder %s21, 0
      %p42 = por %p40, %p41
      %p43 = scmp.ne.s32.totalorder %s29, %s30
      %p44 = scmp.eq.s32.totalorder %s22, 1
      %p45 = por %p43, %p44
      %p47 = scmp.ne.s32.totalorder %s30, %s46
      %p48 = scmp.eq.s32.totalorder %s22, 0
      %p49 = por %p47, %p48
      %s51 = sadd.s32 %s50, 1
      %p54 = scmp.eq.s32.totalorder %s16, 1
      %p55 = scmp.ne.s32.totalorder %s50, %s52
      %p56 = scmp.eq.s32.totalorder %s16, 0
      %p57 = por %p55, %p56
      %p58 = scmp.ne.s32.totalorder %s50, %s52
      %p59 = scmp.eq.s32.totalorder %s21, 1
      %p60 = por %p58, %p59
      %p61 = scmp.ne.s32.totalorder %s52, %s53
      %p62 = scmp.eq.s32.totalorder %s21, 0
      %p63 = por %p61, %p62
      %p64 = scmp.ne.s32.totalorder %s52, %s53
      %p65 = scmp.eq.s32.totalorder %s22, 1
      %p66 = por %p64, %p65
      %p68 = scmp.ne.s32.totalorder %s53, %s67
      %p69 = scmp.eq.s32.totalorder %s22, 0
      %p70 = por %p68, %p69
      %s72 = sadd.s32 %s71, 1
      %p75 = scmp.eq.s32.totalorder %s16, 1
      %p76 = scmp.ne.s32.totalorder %s71, %s73
      %p77 = scmp.eq.s32.totalorder %s16, 0
      %p78 = por %p76, %p77
      %p79 = scmp.ne.s32.totalorder %s71, %s73
      %p80 = scmp.eq.s32.totalorder %s21, 1
      %p81 = por %p79, %p80
      %p82 = scmp.ne.s32.totalorder %s73, %s74
      %p83 = scmp.eq.s32.totalorder %s21, 0
      %p84 = por %p82, %p83
      %p85 = scmp.ne.s32.totalorder %s73, %s74
      %p86 = scmp.eq.s32.totalorder %s22, 1
      %p87 = por %p85, %p86
      %p89 = scmp.ne.s32.totalorder %s74, %s88
      %p90 = scmp.eq.s32.totalorder %s22, 0
      %p91 = por %p89, %p90
      %s92 = ssub.s32 %s16, %s23
      %p93 = scmp.eq.s32.totalorder %s92, 0
      %s95 = sadd.s32 %s94, 1
      %s96 = scalar_select %p93, %s94, %s95
      %p99 = pneg %p93
      %p100 = scmp.eq.s32.totalorder %s16, 1
      %p101 = por %p99, %p100
      %p102 = scmp.ne.s32.totalorder %s94, %s97
      %p103 = scmp.eq.s32.totalorder %s16, 0
      %p104 = por %p102, %p103
      %p105 = scmp.ne.s32.totalorder %s94, %s97
      %p106 = scmp.eq.s32.totalorder %s21, 1
      %p107 = por %p105, %p106
      %p108 = scmp.ne.s32.totalorder %s97, %s98
      %p109 = scmp.eq.s32.totalorder %s21, 0
      %p110 = por %p108, %p109
      %p111 = scmp.ne.s32.totalorder %s97, %s98
      %p112 = scmp.eq.s32.totalorder %s22, 1
      %p113 = por %p111, %p112
      %p115 = scmp.ne.s32.totalorder %s98, %s114
      %p116 = scmp.eq.s32.totalorder %s22, 0
      %p117 = por %p115, %p116
      %p118 = scmp.le.s32.totalorder 1, %s16
      %p119 = scmp.lt.s32.totalorder %s16, 3
      %p120 = pnand %p118, %p119
      %p121 = pneg %p120
      // Predicated region
      $region9: #{tpu_custom_call.1} parent=5 // pred_check
        _
      $region10: #{tpu_custom_call.1} parent=5 // pred_check_branch
        %123 = sbr.rel (%p120) target = $region12
      $region11: #{tpu_custom_call.1} parent=5 // pred_region
        %s124 = ssub.s32 %s16, 1
        // Predicated region
        $region13: #{tpu_custom_call.1} parent=11 // pred_check
          %p125 = pneg %p63
        $region14: #{tpu_custom_call.1} parent=11 // pred_check_branch
          %127 = sbr.rel (%p125) target = $region16
        $region15: #{tpu_custom_call.1} parent=11 // pred_region
          %s129 = ssub.s32 2048, 2048
          %130 = vsyncadd [#allocation6], %s129
          %s131 = sshll.u32 [#allocation5], 4
          %s132 = int_to_ptr.vmem [resolvable:$true] %s131
          %137 = dma.hbm_to_vmem [thread:$0]  %s1, 2048, %s132, [#allocation6], 64, 64, 4
        $region16: #{tpu_custom_call.1} parent=11 // pred_fallthru
          _
        // Predicated region
        $region17: #{tpu_custom_call.1} parent=11 // pred_check
          %p138 = pneg %p84
        $region18: #{tpu_custom_call.1} parent=11 // pred_check_branch
          %140 = sbr.rel (%p138) target = $region20
        $region19: #{tpu_custom_call.1} parent=11 // pred_region
          _
        $region20: #{tpu_custom_call.1} parent=11 // pred_fallthru
          _
      $region12: #{tpu_custom_call.1} parent=5 // pred_fallthru
        _
      %p141 = scmp.lt.s32.totalorder %s16, 2
      // Predicated region
      $region21: #{tpu_custom_call.1} parent=5 // pred_check
        %p142 = pneg %p141
      $region22: #{tpu_custom_call.1} parent=5 // pred_check_branch
        %144 = sbr.rel (%p142) target = $region24
      $region23: #{tpu_custom_call.1} parent=5 // pred_region
        // Predicated region
        $region25: #{tpu_custom_call.1} parent=23 // pred_check
          %p145 = pneg %p36
        $region26: #{tpu_custom_call.1} parent=23 // pred_check_branch
          %147 = sbr.rel (%p145) target = $region28
        $region27: #{tpu_custom_call.1} parent=23 // pred_region
          %s148 = sand.u32 %s26, 1
          %s149 = scalar_lea.sflag [#allocation3], %s148
          %s150 = sand.u32 %s26, 1
          %s151 = smul.addr %s150, 32
          %s152 = scalar_lea.vmem [#allocation2], %s151
          %s153 = smul.u32 2, %s16
          %s155 = ssub.s32 512, 512
          %156 = vsyncadd %s149, %s155
          %s157 = smul.addr %s153, 2
          %s158 = smul.addr %s157, 128
          %s159 = scalar_lea.hbm %s0, %s158
          %s160 = sshll.u32 %s152, 4
          %s161 = int_to_ptr.vmem [resolvable:$true] %s160
          %166 = dma.hbm_to_vmem [thread:$0]  %s159, 512, %s161, %s149, 256, 256, 16
        $region28: #{tpu_custom_call.1} parent=23 // pred_fallthru
          _
      $region24: #{tpu_custom_call.1} parent=5 // pred_fallthru
        _
      %p167 = scmp.le.s32.totalorder 1, %s16
      %p168 = scmp.lt.s32.totalorder %s16, 3
      %p169 = pnand %p167, %p168
      %p170 = pneg %p169
      // Predicated region
      $region29: #{tpu_custom_call.1} parent=5 // pred_check
        _
      $region30: #{tpu_custom_call.1} parent=5 // pred_check_branch
        %172 = sbr.rel (%p169) target = $region32
      $region31: #{tpu_custom_call.1} parent=5 // pred_region
        %s173 = ssub.s32 %s16, 1
        %s174 = sand.u32 %s29, 1
        %s175 = scalar_lea.sflag [#allocation3], %s174
        %s176 = sand.u32 %s29, 1
        %s177 = smul.addr %s176, 32
        %s178 = scalar_lea.vmem [#allocation2], %s177
        // Predicated region
        $region33: #{tpu_custom_call.1} parent=31 // pred_check
          %p179 = pneg %p42
        $region34: #{tpu_custom_call.1} parent=31 // pred_check_branch
          %181 = sbr.rel (%p179) target = $region36
        $region35: #{tpu_custom_call.1} parent=31 // pred_region
          %182 = dma.done %s175, 512
        $region36: #{tpu_custom_call.1} parent=31 // pred_fallthru
          _
        // Predicated region
        $region37: #{tpu_custom_call.1} parent=31 // pred_check
          %p183 = pneg %p63
        $region38: #{tpu_custom_call.1} parent=31 // pred_check_branch
          %185 = sbr.rel (%p183) target = $region40
        $region39: #{tpu_custom_call.1} parent=31 // pred_region
          %186 = dma.done [#allocation6], 2048
        $region40: #{tpu_custom_call.1} parent=31 // pred_fallthru
          _
        %s187 = sand.u32 %s29, 1
        %s188 = scalar_lea.sflag [#allocation3], %s187
        %s189 = sand.u32 %s29, 1
        %s190 = smul.addr %s189, 32
        %s191 = scalar_lea.vmem [#allocation2], %s190
        %p192 = pneg %p42
        %p193 = pneg %p39
        %p194 = pneg %p63
        %p195 = pneg %p60
        %p196 = pneg %p84
        %p197 = pneg %p81
        %p198 = pneg %p110
        %p199 = pneg %p107
        %s200 = sand.u32 %s97, 1
        %s201 = scalar_lea.sflag [#allocation4], %s200
        %s202 = sand.u32 %s97, 1
        %s203 = smul.addr %s202, 2
        %s204 = scalar_lea.vmem [#allocation7], %s203
        %s205 = smul.u32 2, %s21
        %v207 = vld [vmem:[%s178] sm:$0xff]
        %v208 = vld [vmem:[%s178 + $0x8] sm:$0xff]
        %v209 = vld [vmem:[%s178 + $0x10] sm:$0xff]
        %v210 = vld [vmem:[%s178 + $0x18] sm:$0xff]
        %v211 = vunpack.c.l.s8.bf16 %v207
        %v212 = vunpack.c.l.s8.bf16 %v208
        %v213 = vunpack.c.h.s8.bf16 %v207
        %v214 = vunpack.c.h.s8.bf16 %v208
        %v215 = vunpack.c.l.s8.bf16 %v209
        %v216 = vunpack.c.l.s8.bf16 %v210
        %v217 = vunpack.c.h.s8.bf16 %v209
        %v218 = vunpack.c.h.s8.bf16 %v210
        %v219 = vld [vmem:[#allocation5] sm:$0xf]
        %v220 = vld [vmem:[#allocation5 + $0x4] sm:$0xf]
        %v221 = vld [vmem:[#allocation5 + $0x8] sm:$0xf]
        %v222 = vld [vmem:[#allocation5 + $0xc] sm:$0xf]
        %v223 = vld [vmem:[#allocation5 + $0x10] sm:$0xf]
        %v224 = vld [vmem:[#allocation5 + $0x14] sm:$0xf]
        %v225 = vld [vmem:[#allocation5 + $0x18] sm:$0xf]
        %v226 = vld [vmem:[#allocation5 + $0x1c] sm:$0xf]
        %v227 = vld [vmem:[#allocation5 + $0x20] sm:$0xf]
        %v228 = vld [vmem:[#allocation5 + $0x24] sm:$0xf]
        %v229 = vld [vmem:[#allocation5 + $0x28] sm:$0xf]
        %v230 = vld [vmem:[#allocation5 + $0x2c] sm:$0xf]
        %v231 = vld [vmem:[#allocation5 + $0x30] sm:$0xf]
        %v232 = vld [vmem:[#allocation5 + $0x34] sm:$0xf]
        %v233 = vld [vmem:[#allocation5 + $0x38] sm:$0xf]
        %v234 = vld [vmem:[#allocation5 + $0x3c] sm:$0xf]
        %v235 = vld [vmem:[#allocation5 + $0x40] sm:$0xf]
        %v236 = vld [vmem:[#allocation5 + $0x44] sm:$0xf]
        %v237 = vld [vmem:[#allocation5 + $0x48] sm:$0xf]
        %v238 = vld [vmem:[#allocation5 + $0x4c] sm:$0xf]
        %v239 = vld [vmem:[#allocation5 + $0x50] sm:$0xf]
        %v240 = vld [vmem:[#allocation5 + $0x54] sm:$0xf]
        %v241 = vld [vmem:[#allocation5 + $0x58] sm:$0xf]
        %v242 = vld [vmem:[#allocation5 + $0x5c] sm:$0xf]
        %v243 = vld [vmem:[#allocation5 + $0x60] sm:$0xf]
        %v244 = vld [vmem:[#allocation5 + $0x64] sm:$0xf]
        %v245 = vld [vmem:[#allocation5 + $0x68] sm:$0xf]
        %v246 = vld [vmem:[#allocation5 + $0x6c] sm:$0xf]
        %v247 = vld [vmem:[#allocation5 + $0x70] sm:$0xf]
        %v248 = vld [vmem:[#allocation5 + $0x74] sm:$0xf]
        %v249 = vld [vmem:[#allocation5 + $0x78] sm:$0xf]
        %v250 = vld [vmem:[#allocation5 + $0x7c] sm:$0xf]
        %v251 = vld [vmem:[%s2] sm:$0x1]
        %v253 = vlaneseq
        %v254 = vshrl.u32 %v253, 7
        %v255 = vsub.s32 0, %v254
        %v256 = vrot.slane %v251, %v255
        %v290 = vunpack.c.l.b16 %v219
        %v291 = vunpack.c.l.b16 %v220
        %v292 = vunpack.c.l.b16 %v221
        %v293 = vunpack.c.l.b16 %v222
        %v294 = vunpack.c.l.b16 %v223
        %v295 = vunpack.c.l.b16 %v224
        %v296 = vunpack.c.l.b16 %v225
        %v297 = vunpack.c.l.b16 %v226
        %v298 = vunpack.c.l.b16 %v227
        %v299 = vunpack.c.l.b16 %v228
        %v300 = vunpack.c.l.b16 %v229
        %v301 = vunpack.c.l.b16 %v230
        %v302 = vunpack.c.l.b16 %v231
        %v303 = vunpack.c.l.b16 %v232
        %v304 = vunpack.c.l.b16 %v233
        %v305 = vunpack.c.l.b16 %v234
        %v306 = vunpack.c.l.b16 %v235
        %v307 = vunpack.c.l.b16 %v236
        %v308 = vunpack.c.l.b16 %v237
        %v309 = vunpack.c.l.b16 %v238
        %v310 = vunpack.c.l.b16 %v239
        %v311 = vunpack.c.l.b16 %v240
        %v312 = vunpack.c.l.b16 %v241
        %v313 = vunpack.c.l.b16 %v242
        %v314 = vunpack.c.l.b16 %v243
        %v315 = vunpack.c.l.b16 %v244
        %v316 = vunpack.c.l.b16 %v245
        %v317 = vunpack.c.l.b16 %v246
        %v318 = vunpack.c.l.b16 %v247
        %v319 = vunpack.c.l.b16 %v248
        %v320 = vunpack.c.l.b16 %v249
        %v321 = vunpack.c.l.b16 %v250
        %v322 = vpack.c.b16 %v291, %v290
        %v323 = vpack.c.b16 %v293, %v292
        %v324 = vpack.c.b16 %v295, %v294
        %v325 = vpack.c.b16 %v297, %v296
        %v326 = vpack.c.b16 %v299, %v298
        %v327 = vpack.c.b16 %v301, %v300
        %v328 = vpack.c.b16 %v303, %v302
        %v329 = vpack.c.b16 %v305, %v304
        %v330 = vpack.c.b16 %v307, %v306
        %v331 = vpack.c.b16 %v309, %v308
        %v332 = vpack.c.b16 %v311, %v310
        %v333 = vpack.c.b16 %v313, %v312
        %v334 = vpack.c.b16 %v315, %v314
        %v335 = vpack.c.b16 %v317, %v316
        %v336 = vpack.c.b16 %v319, %v318
        %v337 = vpack.c.b16 %v321, %v320
        %354 = vmatprep.subr.bf16.mxu0 0
        %355 = vmatpush1.bf16.msra.mxu0 %v322
        %356 = vmatprep.subr.bf16.mxu0 0
        %357 = vmatpush1.bf16.msra.mxu0 %v323
        %358 = vmatprep.subr.bf16.mxu0 0
        %359 = vmatpush1.bf16.msra.mxu0 %v324
        %360 = vmatprep.subr.bf16.mxu0 0
        %361 = vmatpush1.bf16.msra.mxu0 %v325
        %362 = vmatprep.subr.bf16.mxu0 0
        %363 = vmatpush1.bf16.msra.mxu0 %v326
        %364 = vmatprep.subr.bf16.mxu0 0
        %365 = vmatpush1.bf16.msra.mxu0 %v327
        %366 = vmatprep.subr.bf16.mxu0 0
        %367 = vmatpush1.bf16.msra.mxu0 %v328
        %368 = vmatprep.subr.bf16.mxu0 0
        %369 = vmatpush1.bf16.msra.mxu0 %v329
        %370 = vmatprep.subr.bf16.mxu0 0
        %371 = vmatpush1.bf16.msra.mxu0 %v330
        %372 = vmatprep.subr.bf16.mxu0 0
        %373 = vmatpush1.bf16.msra.mxu0 %v331
        %374 = vmatprep.subr.bf16.mxu0 0
        %375 = vmatpush1.bf16.msra.mxu0 %v332
        %376 = vmatprep.subr.bf16.mxu0 0
        %377 = vmatpush1.bf16.msra.mxu0 %v333
        %378 = vmatprep.subr.bf16.mxu0 0
        %379 = vmatpush1.bf16.msra.mxu0 %v334
        %380 = vmatprep.subr.bf16.mxu0 0
        %381 = vmatpush1.bf16.msra.mxu0 %v335
        %382 = vmatprep.subr.bf16.mxu0 0
        %383 = vmatpush1.bf16.msra.mxu0 %v336
        %384 = vmatprep.subr.bf16.mxu0 0
        %385 = vmatpush1.bf16.msra.mxu0 %v337
        %386 = vmatprep.mubr.bf16.mxu0 %v212
        %387 = vmatmul.mubr.bf16.gmra.mrb[0].mxu0 %v211
        %v388 = vpop.f32.mrb[0].mxu0
        %v389 = vadd.f32 %v256, %v388
        %v390 = vpop.f32.mrb[0].mxu0
        %v391 = vpop.f32.mrb[0].mxu0
        %v392 = vadd.f32 %v256, %v391
        %v393 = vpop.f32.mrb[0].mxu0
        %394 = vmatprep.mubr.bf16.mxu0 %v214
        %395 = vmatmul.mubr.bf16.gmra.mrb[0].mxu0 %v213
        %v396 = vpop.f32.mrb[0].mxu0
        %v397 = vadd.f32 %v256, %v396
        %v398 = vpop.f32.mrb[0].mxu0
        %v399 = vpop.f32.mrb[0].mxu0
        %v400 = vadd.f32 %v256, %v399
        %v401 = vpop.f32.mrb[0].mxu0
        %402 = vmatprep.mubr.bf16.mxu0 %v216
        %403 = vmatmul.mubr.bf16.gmra.mrb[0].mxu0 %v215
        %v404 = vpop.f32.mrb[0].mxu0
        %v405 = vadd.f32 %v256, %v404
        %v406 = vpop.f32.mrb[0].mxu0
        %v407 = vpop.f32.mrb[0].mxu0
        %v408 = vadd.f32 %v256, %v407
        %v409 = vpop.f32.mrb[0].mxu0
        %410 = vmatprep.mubr.bf16.mxu0 %v218
        %411 = vmatmul.mubr.bf16.gmra.mrb[0].mxu0 %v217
        %v412 = vpop.f32.mrb[0].mxu0
        %v413 = vadd.f32 %v256, %v412
        %v414 = vpop.f32.mrb[0].mxu0
        %v415 = vpop.f32.mrb[0].mxu0
        %v416 = vadd.f32 %v256, %v415
        %v417 = vpop.f32.mrb[0].mxu0
        %418 = vdwg.mxu0
        %v419 = vmax.f32 %v389, 0.0
        %v420 = vmax.f32 %v392, 0.0
        %v421 = vmax.f32 %v397, 0.0
        %v422 = vmax.f32 %v400, 0.0
        %v423 = vmax.f32 %v405, 0.0
        %v424 = vmax.f32 %v408, 0.0
        %v425 = vmax.f32 %v413, 0.0
        %v426 = vmax.f32 %v416, 0.0
        %s427 = smul.u32 %s21, 64
        %v428 = vlaneseq
        %v429 = vshrl.u32 %v428, 7
        %v430 = vadd.s32 %v429, 8
        %v431 = vadd.s32 %v429, 16
        %v432 = vadd.s32 %v429, 24
        %v433 = vadd.s32 %v429, 32
        %v434 = vadd.s32 %v429, 40
        %v435 = vadd.s32 %v429, 48
        %v436 = vadd.s32 %v429, 56
        %v437 = vstv %s427
        %v438 = vadd.s32 %v437, %v429
        %v439 = vadd.s32 %v437, %v430
        %v440 = vadd.s32 %v437, %v431
        %v441 = vadd.s32 %v437, %v432
        %v442 = vadd.s32 %v437, %v433
        %v443 = vadd.s32 %v437, %v434
        %v444 = vadd.s32 %v437, %v435
        %v445 = vadd.s32 %v437, %v436
        %vm446 = vcmp.lt.s32.totalorder %v438, 100
        %vm447 = vcmp.lt.s32.totalorder %v439, 100
        %vm448 = vcmp.lt.s32.totalorder %v440, 100
        %vm449 = vcmp.lt.s32.totalorder %v441, 100
        %vm450 = vcmp.lt.s32.totalorder %v442, 100
        %vm451 = vcmp.lt.s32.totalorder %v443, 100
        %vm452 = vcmp.lt.s32.totalorder %v444, 100
        %vm453 = vcmp.lt.s32.totalorder %v445, 100
        %v454 = vsel %vm446, 1, 0
        %v455 = vsel %vm447, 1, 0
        %v456 = vsel %vm448, 1, 0
        %v457 = vsel %vm449, 1, 0
        %v458 = vsel %vm450, 1, 0
        %v459 = vsel %vm451, 1, 0
        %v460 = vsel %vm452, 1, 0
        %v461 = vsel %vm453, 1, 0
        %vm462 = vcmp.eq.s32.totalorder %v454, 1
        %vm463 = vcmp.eq.s32.totalorder %v455, 1
        %vm464 = vcmp.eq.s32.totalorder %v456, 1
        %vm465 = vcmp.eq.s32.totalorder %v457, 1
        %vm466 = vcmp.eq.s32.totalorder %v458, 1
        %vm467 = vcmp.eq.s32.totalorder %v459, 1
        %vm468 = vcmp.eq.s32.totalorder %v460, 1
        %vm469 = vcmp.eq.s32.totalorder %v461, 1
        %v470 = vsel %vm462, %v419, 0.0
        %v471 = vsel %vm463, %v420, 0.0
        %v472 = vsel %vm464, %v421, 0.0
        %v473 = vsel %vm465, %v422, 0.0
        %v474 = vsel %vm466, %v423, 0.0
        %v475 = vsel %vm467, %v424, 0.0
        %v476 = vsel %vm468, %v425, 0.0
        %v477 = vsel %vm469, %v426, 0.0
        %v478 = vadd.f32 %v470, %v471
        %v479 = vadd.f32 %v478, %v472
        %v480 = vadd.f32 %v479, %v473
        %v481 = vadd.f32 %v480, %v474
        %v482 = vadd.f32 %v481, %v475
        %v483 = vadd.f32 %v482, %v476
        %v484 = vadd.f32 %v483, %v477
        %v485 = vrot.slane %v484, 4
        %v486 = vadd.f32 %v484, %v485
        %v487 = vrot.slane %v486, 2
        %v488 = vadd.f32 %v486, %v487
        %v489 = vrot.slane %v488, 1
        %v490 = vadd.f32 %v488, %v489
        %v491 = vmul.f32 %v470, %v470
        %v492 = vmul.f32 %v471, %v471
        %v493 = vmul.f32 %v472, %v472
        %v494 = vmul.f32 %v473, %v473
        %v495 = vmul.f32 %v474, %v474
        %v496 = vmul.f32 %v475, %v475
        %v497 = vmul.f32 %v476, %v476
        %v498 = vmul.f32 %v477, %v477
        %v499 = vadd.f32 %v491, %v492
        %v500 = vadd.f32 %v499, %v493
        %v501 = vadd.f32 %v500, %v494
        %v502 = vadd.f32 %v501, %v495
        %v503 = vadd.f32 %v502, %v496
        %v504 = vadd.f32 %v503, %v497
        %v505 = vadd.f32 %v504, %v498
        %v506 = vrot.slane %v505, 4
        %v507 = vadd.f32 %v505, %v506
        %v508 = vrot.slane %v507, 2
        %v509 = vadd.f32 %v507, %v508
        %v510 = vrot.slane %v509, 1
        %v511 = vadd.f32 %v509, %v510
        %vm512 = vcmask 1040384
        %v513 = vsel %vm512, %v490, %v511
        %514 = vst [vmem:[%s204] sm:$0x3] %v513
        %s515 = sand.u32 %s97, 1
        %s516 = scalar_lea.sflag [#allocation4], %s515
        %s517 = sand.u32 %s97, 1
        %s518 = smul.addr %s517, 2
        %s519 = scalar_lea.vmem [#allocation7], %s518
        // Predicated region
        $region41: #{tpu_custom_call.1} parent=31 // pred_check
          %p520 = pneg %p107
        $region42: #{tpu_custom_call.1} parent=31 // pred_check_branch
          %522 = sbr.rel (%p520) target = $region44
        $region43: #{tpu_custom_call.1} parent=31 // pred_region
          %s524 = ssub.s32 32, 32
          %525 = vsyncadd %s516, %s524
          %s526 = smul.addr %s21, 32
          %s527 = scalar_lea.hbm %s3, %s526
          %s529 = sshll.u32 %s519, 4
          %s530 = int_to_ptr.vmem [resolvable:$true] %s529
          %532 = dma.vmem_to_hbm [thread:$0]  %s530, 32, %s527, %s516
        $region44: #{tpu_custom_call.1} parent=31 // pred_fallthru
          _
      $region32: #{tpu_custom_call.1} parent=5 // pred_fallthru
        _
      %p533 = scmp.le.s32.totalorder 2, %s16
      // Predicated region
      $region45: #{tpu_custom_call.1} parent=5 // pred_check
        %p534 = pneg %p533
      $region46: #{tpu_custom_call.1} parent=5 // pred_check_branch
        %536 = sbr.rel (%p534) target = $region48
      $region47: #{tpu_custom_call.1} parent=5 // pred_region
        %s537 = ssub.s32 %s16, 2
        // Predicated region
        $region49: #{tpu_custom_call.1} parent=47 // pred_check
          %p538 = pneg %p113
        $region50: #{tpu_custom_call.1} parent=47 // pred_check_branch
          %540 = sbr.rel (%p538) target = $region52
        $region51: #{tpu_custom_call.1} parent=47 // pred_region
          %s541 = sand.u32 %s98, 1
          %s542 = scalar_lea.sflag [#allocation4], %s541
          %s543 = sand.u32 %s98, 1
          %s544 = smul.addr %s543, 2
          %s545 = scalar_lea.vmem [#allocation7], %s544
          %546 = dma.done %s542, 32
        $region52: #{tpu_custom_call.1} parent=47 // pred_fallthru
          _
      $region48: #{tpu_custom_call.1} parent=5 // pred_fallthru
        _
    $region6: #{tpu_custom_call.1} parent=1 // loop_footer
      %s20 = sadd.s32 1, %s16
    $region7: #{tpu_custom_call.1} parent=1 // loop_footer_branch
      %15 = sbr.rel target = $region3
    $region8: #{tpu_custom_call.1} parent=1 // loop_exit
      _
    %547 = vsyncpa [#allocation3], 1
    %s548 = scalar_lea.sflag [#allocation3], 1
    %549 = vsyncpa %s548, 1
    %550 = vsyncpa [#allocation6], 1
    %551 = vsyncpa [#allocation4], 1
    %s552 = scalar_lea.sflag [#allocation4], 1
    %553 = vsyncpa %s552, 1

</llo_original>
